<compile_context>
chip_gen: v5e
topology: v5e:2x2
jax: 0.10.0
libtpu: 0.0.40
codegen_flags: <defaults>
</compile_context>

<pallas_src>
import functools

import jax
import jax.numpy as jnp
from jax import lax
from jax.experimental import pallas as pl
from jax.experimental.pallas import tpu as pltpu


def _grace_kernel(edit_ref, x_ref, w_ref, b_ref, val_ref, o_ref, *, tk):
    i = pl.program_id(0)                 # T tile
    k = pl.program_id(2)                 # K (reduction) tile
    tm = o_ref.shape[0]

    # ---- init: fold the bias into the resident output/accumulator tile -----
    @pl.when(k == 0)
    def _():
        o_ref[...] = jnp.broadcast_to(b_ref[...], o_ref.shape)

    # ---- tiled linear layer: o += x[:, k-slice] @ W_tile^T ------------- MXU
    # x panel is resident (tm, K); slice the lane-aligned K chunk per step.
    koff = pl.multiple_of(k * tk, tk)
    x_blk = x_ref[:, pl.ds(koff, tk)]
    o_ref[...] += lax.dot_general(
        x_blk.astype(jnp.bfloat16), w_ref[...].astype(jnp.bfloat16),
        dimension_numbers=(((1,), (1,)), ((), ())),
        preferred_element_type=jnp.float32)

    # ---- epilogue: GRACE edit of rows < token_to_edit -----------------------
    @pl.when(k == pl.num_programs(2) - 1)
    def _():
        # edit_ref[0] == token_to_edit when the query is within epsilon of its
        # nearest key, else 0 (computed once in the wrapper; SMEM scalar).
        n_edit = jnp.clip(edit_ref[0] - i * tm, 0, tm)

        @pl.when(n_edit == tm)                                 # fully edited
        def _():
            o_ref[...] = jnp.broadcast_to(val_ref[...], o_ref.shape)

        @pl.when(jnp.logical_and(n_edit > 0, n_edit < tm))     # boundary tile
        def _():
            rows = lax.broadcasted_iota(jnp.int32, (tm, 1), 0)
            o_ref[...] = jnp.where(rows < n_edit, val_ref[...], o_ref[...])
        # n_edit == 0: o_ref already holds the plain linear output.


def _tile_candidates(dim, align, prefer):
    """Descending list of legal tile sizes for `dim`: divisors of `dim`
    aligned to `align` and capped at `prefer`, plus the always-legal full
    extent."""
    cands = set()
    if dim % align == 0:
        t = (min(prefer, dim) // align) * align
        while t >= align:
            if dim % t == 0:
                cands.add(t)
            t -= align
    cands.add(dim)
    return sorted(cands, reverse=True)


def _pick_tiles(T, K, V, x_itemsize, w_itemsize, budget_bytes):
    """Pick (tm, tn, tk): prefer grid[0] == 1 (W streamed exactly once), then
    the largest W tile that keeps pipelined VMEM under `budget_bytes`."""
    def vmem(tm, tn, tk):
        return (2 * tm * K * x_itemsize        # resident x panel (dbl-buffered)
                + 2 * tn * tk * w_itemsize     # W tile (dbl-buffered)
                + 2 * tm * tn * 4              # resident f32 output tile
                + 4 * tn * 4 + (64 << 10))     # bias + value rows + slack

    tm_c = _tile_candidates(T, 8, 1 << 30)     # full T first -> grid[0] == 1
    tn_c = _tile_candidates(V, 128, 2048)
    tk_c = _tile_candidates(K, 128, 2048)
    for tm in tm_c:
        for tn in tn_c:
            for tk in tk_c:
                if vmem(tm, tn, tk) <= budget_bytes:
                    return tm, tn, tk
    return tm_c[-1], tn_c[-1], tk_c[-1]


def grace_forward(x, weight, bias, keys, values, epsilons, key_id=-1,
                  *, tm=None, tn=None, tk=None,
                  vmem_budget_bytes=24 << 20, vmem_limit_bytes=48 << 20):
    """GRACEAdaptor.forward (inference, codebook present).

    x:        [B, T, K]  (B must be 1 -- the torch broadcast is only well
                          defined for batch 1)
    weight:   [V, K]     torch nn.Linear weight, transpose=True convention
    bias:     [V]
    keys:     [NK, K]
    values:   [NK, V]
    epsilons: [NK]
    """
    B, T, K = x.shape
    assert B == 1, "reference semantics require batch size 1"
    V, Kw = weight.shape
    assert Kw == K

    # token_to_edit = min(key_id, T - 1); normalize torch's negative index.
    tte = min(int(key_id), T - 1)
    tte = tte if tte >= 0 else T + tte

    if tm is None or tn is None or tk is None:
        atm, atn, atk = _pick_tiles(T, K, V, x.dtype.itemsize,
                                    weight.dtype.itemsize, vmem_budget_bytes)
        tm = tm if tm is not None else atm
        tn = tn if tn is not None else atn
        tk = tk if tk is not None else atk
    # v7x megacore: keep >= 2 parallel output tiles so both TensorCores stream
    # disjoint halves of W (no effect when the grid already has >= 2 tiles).
    if (T // tm) * (V // tn) < 2:
        for tn2 in _tile_candidates(V, 128, tn // 2):
            if tn2 < tn:
                tn = tn2
                break
    assert T % tm == 0 and V % tn == 0 and K % tk == 0

    x2 = x[0]                                                   # [T, K], caller dtype
    bias2 = bias.reshape(1, V).astype(jnp.float32)

    # --- GRACE retrieval (tiny NK x K problem) done once in the wrapper -----
    # Uses sqrt(distance) <= epsilon exactly like the torch reference.
    query = x2[tte].astype(jnp.float32)                         # [K]
    d2 = jnp.sum((keys.astype(jnp.float32) - query[None, :]) ** 2, axis=-1)
    nearest = jnp.argmin(d2)                                    # first-min, like torch
    smallest = jnp.sqrt(d2[nearest])
    within = smallest <= epsilons[nearest].astype(jnp.float32)
    edit_rows = jnp.where(within, jnp.int32(tte), jnp.int32(0)).reshape(1)
    chosen_value = lax.dynamic_slice_in_dim(
        values.astype(jnp.float32), nearest, 1, axis=0)         # [1, V]

    grid = (T // tm, V // tn, K // tk)
    kernel = functools.partial(_grace_kernel, tk=tk)

    flops = 2 * T * K * V
    bytes_accessed = (T * K * x2.dtype.itemsize                 # x streamed once
                      + V * K * weight.dtype.itemsize           # W streamed once
                      + 2 * V * 4 + T * V * 4)                  # bias/value + out

    out = pl.pallas_call(
        kernel,
        out_shape=jax.ShapeDtypeStruct((T, V), jnp.float32),
        grid_spec=pltpu.PrefetchScalarGridSpec(
            num_scalar_prefetch=1,                              # edit_rows -> SMEM
            grid=grid,
            in_specs=[
                # x panel: resident across (j, k) -> streamed from HBM once.
                pl.BlockSpec((tm, K), lambda i, j, k, e: (i, 0)),
                # W tile in torch [V, K] layout, contracted on K of both sides.
                pl.BlockSpec((tn, tk), lambda i, j, k, e: (j, k)),
                pl.BlockSpec((1, tn), lambda i, j, k, e: (0, j)),   # bias row
                pl.BlockSpec((1, tn), lambda i, j, k, e: (0, j)),   # chosen value row
            ],
            out_specs=pl.BlockSpec((tm, tn), lambda i, j, k, e: (i, j)),
        ),
        compiler_params=pltpu.CompilerParams(
            dimension_semantics=("parallel", "parallel", "arbitrary"),
            vmem_limit_bytes=vmem_limit_bytes),
        cost_estimate=pl.CostEstimate(
            flops=flops, transcendentals=0, bytes_accessed=bytes_accessed),
    )(edit_rows, x2, weight, bias2, chosen_value)
    return out[None]                                            # [1, T, V]


def _reference(x, weight, bias, keys, values, epsilons, key_id=-1):
    """Plain-JAX replica of the torch forward (B == 1), with bf16-rounded
    x / W so it matches the kernel's MXU feed precision."""
    B, T, K = x.shape
    tte = min(int(key_id), T - 1)
    tte = tte if tte >= 0 else T + tte
    xq = x.astype(jnp.bfloat16).astype(jnp.float32)
    wq = weight.astype(jnp.bfloat16).astype(jnp.float32)
    layer_out = jnp.einsum("btk,vk->btv", xq, wq) + bias
    query = x[:, tte, :].astype(jnp.float32)                    # [1, K]
    dists = jnp.sqrt(jnp.sum((keys - query) ** 2, axis=-1))     # [NK]
    idx = jnp.argmin(dists)
    smallest = dists[idx]
    chosen_value = values[idx]
    eps_c = epsilons[idx]
    edited = jnp.where(smallest <= eps_c, chosen_value[None, None, :],
                       layer_out[:, :tte])
    return layer_out.at[:, :tte].set(edited)


if __name__ == "__main__":
    B, T, K, V, NK = 1, 32, 512, 512, 8
    init_epsilon = 1.0

    root = jax.random.PRNGKey(0)
    kx, kw, kb, kk, kv = jax.random.split(root, 5)

    x = jax.random.normal(kx, (B, T, K), dtype=jnp.float32)
    weight = jax.random.normal(kw, (V, K), dtype=jnp.float32) * 0.05   # [V, K]
    bias = jax.random.normal(kb, (V,), dtype=jnp.float32) * 0.05
    keys = jax.random.normal(kk, (NK, K), dtype=jnp.float32)
    values = jax.random.normal(kv, (NK, V), dtype=jnp.float32)
    epsilons = jnp.full((NK,), init_epsilon, dtype=jnp.float32)

    # make key 0 coincide with the query token so the edit path triggers
    keys = keys.at[0].set(x[0, -1])

    ref = _reference(x, weight, bias, keys, values, epsilons, key_id=-1)

    # 1) explicit small tiles: exercises a fully-edited T tile, the partial
    #    boundary tile, multiple V tiles and a multi-step K reduction over the
    #    resident x panel.
    out = grace_forward(x, weight, bias, keys, values, epsilons, key_id=-1,
                        tm=16, tn=256, tk=256)
    out = jax.block_until_ready(out)
    assert out.shape == (B, T, V)
    assert jnp.allclose(out, ref, atol=5e-3, rtol=5e-3), \
        "edit-path mismatch (explicit tiles)"

    # 2) auto-picked tiles: grid[0] == 1 (W streamed once); tn is split so the
    #    grid keeps >= 2 parallel output tiles for v7x megacore.
    out_auto = grace_forward(x, weight, bias, keys, values, epsilons, key_id=-1)
    out_auto = jax.block_until_ready(out_auto)
    assert jnp.allclose(out_auto, ref, atol=5e-3, rtol=5e-3), \
        "edit-path mismatch (auto tiles)"

    # 3) no-edit path: distant keys + tiny epsilons -> plain linear output
    keys2 = jax.random.normal(jax.random.PRNGKey(7), (NK, K), dtype=jnp.float32)
    eps_small = jnp.full((NK,), 1e-6, dtype=jnp.float32)
    ref2 = _reference(x, weight, bias, keys2, values, eps_small, key_id=-1)
    out2 = grace_forward(x, weight, bias, keys2, values, eps_small, key_id=-1)
    out2 = jax.block_until_ready(out2)
    assert jnp.allclose(out2, ref2, atol=5e-3, rtol=5e-3), "no-edit mismatch"

    print("KERNEL_OK")
</pallas_src>

<mosaic_0001>
module attributes {stable_mosaic.version = 11 : i64} {
  func.func @_grace_kernel(%arg0: i32, %arg1: i32, %arg2: i32, %arg3: memref<1xi32, #tpu.memory_space<smem>>, %arg4: memref<16x512xf32, #tpu.memory_space<vmem>>, %arg5: memref<256x256xf32, #tpu.memory_space<vmem>>, %arg6: memref<1x256xf32, #tpu.memory_space<vmem>>, %arg7: memref<1x256xf32, #tpu.memory_space<vmem>>, %arg8: memref<16x256xf32, #tpu.memory_space<vmem>>) attributes {dimension_semantics = [#tpu.dimension_semantics<parallel>, #tpu.dimension_semantics<parallel>, #tpu.dimension_semantics<arbitrary>], iteration_bounds = array<i64: 2, 2, 2>, scalar_prefetch = 1 : i64, scratch_operands = 0 : i64, tpu.core_type = #tpu.core_type<tc>, window_params = [{transform_indices = @transform_0, window_bounds = array<i64: 16, 512>}, {transform_indices = @transform_1, window_bounds = array<i64: 256, 256>}, {transform_indices = @transform_2, window_bounds = array<i64: 1, 256>}, {transform_indices = @transform_3, window_bounds = array<i64: 1, 256>}, {transform_indices = @transform_4, window_bounds = array<i64: 16, 256>}]} {
    %c0_i32 = arith.constant 0 : i32
    %0 = arith.cmpi eq, %arg2, %c0_i32 : i32
    %1 = arith.extui %0 : i1 to i32
    %c0_i32_0 = arith.constant 0 : i32
    %2 = arith.cmpi ne, %1, %c0_i32_0 : i32
    scf.if %2 {
      %c0_8 = arith.constant 0 : index
      %c0_9 = arith.constant 0 : index
      %17 = vector.load %arg6[%c0_8, %c0_9] : memref<1x256xf32, #tpu.memory_space<vmem>>, vector<1x256xf32>
      %18 = vector.shape_cast %17 : vector<1x256xf32> to vector<1x256xf32>
      %19 = vector.broadcast %18 : vector<1x256xf32> to vector<16x256xf32>
      %c0_10 = arith.constant 0 : index
      %c0_11 = arith.constant 0 : index
      %20 = vector.load %arg8[%c0_10, %c0_11] : memref<16x256xf32, #tpu.memory_space<vmem>>, vector<16x256xf32>
      tpu.vector_store %arg8[%c0_10, %c0_11], %19 {strides = array<i32>} : memref<16x256xf32, #tpu.memory_space<vmem>>, vector<16x256xf32>,
    } else {
    }
    %c256_i32 = arith.constant 256 : i32
    %3 = arith.muli %arg2, %c256_i32 : i32
    %4 = tpu.assume_multiple %3, 256 : i32
    %c0 = arith.constant 0 : index
    %5 = arith.index_cast %4 : i32 to index
    %6 = vector.load %arg4[%c0, %5] : memref<16x512xf32, #tpu.memory_space<vmem>>, vector<16x256xf32>
    %c0_1 = arith.constant 0 : index
    %c0_2 = arith.constant 0 : index
    %7 = vector.load %arg8[%c0_1, %c0_2] : memref<16x256xf32, #tpu.memory_space<vmem>>, vector<16x256xf32>
    %8 = arith.truncf %6 : vector<16x256xf32> to vector<16x256xbf16>
    %c0_3 = arith.constant 0 : index
    %c0_4 = arith.constant 0 : index
    %9 = vector.load %arg5[%c0_3, %c0_4] : memref<256x256xf32, #tpu.memory_space<vmem>>, vector<256x256xf32>
    %10 = arith.truncf %9 : vector<256x256xf32> to vector<256x256xbf16>
    %cst = arith.constant dense<0.000000e+00> : vector<16x256xf32>
    %11 = tpu.matmul %8, %10, %cst {dimension_numbers = #tpu.dot_dimension_numbers<[1], [1], [0], [0], [0, 0, 1, 0], [], []>} : vector<16x256xbf16>, vector<256x256xbf16>, vector<16x256xf32> -> vector<16x256xf32>
    %12 = arith.addf %7, %11 : vector<16x256xf32>
    %c0_5 = arith.constant 0 : index
    %c0_6 = arith.constant 0 : index
    %13 = vector.load %arg8[%c0_5, %c0_6] : memref<16x256xf32, #tpu.memory_space<vmem>>, vector<16x256xf32>
    tpu.vector_store %arg8[%c0_5, %c0_6], %12 {strides = array<i32>} : memref<16x256xf32, #tpu.memory_space<vmem>>, vector<16x256xf32>,
    %c1_i32 = arith.constant 1 : i32
    %14 = arith.cmpi eq, %arg2, %c1_i32 : i32
    %15 = arith.extui %14 : i1 to i32
    %c0_i32_7 = arith.constant 0 : i32
    %16 = arith.cmpi ne, %15, %c0_i32_7 : i32
    scf.if %16 {
      %c0_8 = arith.constant 0 : index
      %17 = memref.load %arg3[%c0_8] : memref<1xi32, #tpu.memory_space<smem>>
      %c16_i32 = arith.constant 16 : i32
      %18 = arith.muli %arg0, %c16_i32 : i32
      %19 = arith.subi %17, %18 : i32
      %c0_i32_9 = arith.constant 0 : i32
      %c16_i32_10 = arith.constant 16 : i32
      %20 = arith.maxsi %c0_i32_9, %19 : i32
      %21 = arith.minsi %c16_i32_10, %20 : i32
      %c16_i32_11 = arith.constant 16 : i32
      %22 = arith.cmpi eq, %21, %c16_i32_11 : i32
      %23 = arith.extui %22 : i1 to i32
      %c0_i32_12 = arith.constant 0 : i32
      %24 = arith.cmpi ne, %23, %c0_i32_12 : i32
      scf.if %24 {
        %c0_16 = arith.constant 0 : index
        %c0_17 = arith.constant 0 : index
        %30 = vector.load %arg7[%c0_16, %c0_17] : memref<1x256xf32, #tpu.memory_space<vmem>>, vector<1x256xf32>
        %31 = vector.shape_cast %30 : vector<1x256xf32> to vector<1x256xf32>
        %32 = vector.broadcast %31 : vector<1x256xf32> to vector<16x256xf32>
        %c0_18 = arith.constant 0 : index
        %c0_19 = arith.constant 0 : index
        %33 = vector.load %arg8[%c0_18, %c0_19] : memref<16x256xf32, #tpu.memory_space<vmem>>, vector<16x256xf32>
        tpu.vector_store %arg8[%c0_18, %c0_19], %32 {strides = array<i32>} : memref<16x256xf32, #tpu.memory_space<vmem>>, vector<16x256xf32>,
      } else {
      }
      %c0_i32_13 = arith.constant 0 : i32
      %25 = arith.cmpi sgt, %21, %c0_i32_13 : i32
      %c16_i32_14 = arith.constant 16 : i32
      %26 = arith.cmpi slt, %21, %c16_i32_14 : i32
      %27 = arith.andi %25, %26 : i1
      %28 = arith.extui %27 : i1 to i32
      %c0_i32_15 = arith.constant 0 : i32
      %29 = arith.cmpi ne, %28, %c0_i32_15 : i32
      scf.if %29 {
        %30 = tpu.iota {dimensions = array<i32: 0>} : vector<16x1xi32>
        %31 = vector.broadcast %21 : i32 to vector<16x1xi32>
        %32 = arith.cmpi slt, %30, %31 : vector<16x1xi32>
        %c0_16 = arith.constant 0 : index
        %c0_17 = arith.constant 0 : index
        %33 = vector.load %arg7[%c0_16, %c0_17] : memref<1x256xf32, #tpu.memory_space<vmem>>, vector<1x256xf32>
        %c0_18 = arith.constant 0 : index
        %c0_19 = arith.constant 0 : index
        %34 = vector.load %arg8[%c0_18, %c0_19] : memref<16x256xf32, #tpu.memory_space<vmem>>, vector<16x256xf32>
        %35 = vector.shape_cast %32 : vector<16x1xi1> to vector<16x1xi1>
        %36 = vector.broadcast %35 : vector<16x1xi1> to vector<16x256xi1>
        %37 = vector.shape_cast %33 : vector<1x256xf32> to vector<1x256xf32>
        %38 = vector.broadcast %37 : vector<1x256xf32> to vector<16x256xf32>
        %39 = arith.select %36, %38, %34 : vector<16x256xi1>, vector<16x256xf32>
        %c0_20 = arith.constant 0 : index
        %c0_21 = arith.constant 0 : index
        %40 = vector.load %arg8[%c0_20, %c0_21] : memref<16x256xf32, #tpu.memory_space<vmem>>, vector<16x256xf32>
        tpu.vector_store %arg8[%c0_20, %c0_21], %39 {strides = array<i32>} : memref<16x256xf32, #tpu.memory_space<vmem>>, vector<16x256xf32>,
      } else {
      }
    } else {
    }
    return
  }
  func.func @transform_0(%arg0: i32, %arg1: i32, %arg2: i32, %arg3: memref<1xi32, #tpu.memory_space<smem>>) -> (i32, i32) {
    %c0_i32 = arith.constant 0 : i32
    %c0_i32_0 = arith.constant 0 : i32
    return %arg0, %c0_i32 : i32, i32
  }
  func.func @transform_1(%arg0: i32, %arg1: i32, %arg2: i32, %arg3: memref<1xi32, #tpu.memory_space<smem>>) -> (i32, i32) {
    %c0_i32 = arith.constant 0 : i32
    return %arg1, %arg2 : i32, i32
  }
  func.func @transform_2(%arg0: i32, %arg1: i32, %arg2: i32, %arg3: memref<1xi32, #tpu.memory_space<smem>>) -> (i32, i32) {
    %c0_i32 = arith.constant 0 : i32
    %c0_i32_0 = arith.constant 0 : i32
    return %c0_i32, %arg1 : i32, i32
  }
  func.func @transform_3(%arg0: i32, %arg1: i32, %arg2: i32, %arg3: memref<1xi32, #tpu.memory_space<smem>>) -> (i32, i32) {
    %c0_i32 = arith.constant 0 : i32
    %c0_i32_0 = arith.constant 0 : i32
    return %c0_i32, %arg1 : i32, i32
  }
  func.func @transform_4(%arg0: i32, %arg1: i32, %arg2: i32, %arg3: memref<1xi32, #tpu.memory_space<smem>>) -> (i32, i32) {
    %c0_i32 = arith.constant 0 : i32
    return %arg0, %arg1 : i32, i32
  }
}

</mosaic_0001>

<llo_original>
// kernel: tpu_custom_call.1
$region0: #{tpu_custom_call.1}
  #allocation0 [shape = 'u32[]', space=smem, size = 0x4, offset = 0x4, fixed_abs, tag = 'smem constant byte address 0x4 - core index']
  #allocation1 [shape = 'u32[72,128]{1,0:T(1,128)}', space=vmem, size = 0x9000, scoped, tag = 'internal scratch']
  #allocation2 [shape = 's32[1]{0}', space=sflag, size = 0x4, scoped, tag = 'scoped memory for tpu_custom_call.1']
  #allocation3 [shape = 's32[1]{0:T(128)S(6)}', space=smem, size = 0x200, scoped, tag = 'prefetched SMEM operand 0']
  %s0 = inlined_call_operand.<no memory space> [shape: s32[1], index: 0, kind: input, shape index: {}]
  %s1 = inlined_call_operand.hbm [shape: f32[32,512], index: 1, kind: input, shape index: {}]
  %s2 = inlined_call_operand.hbm [shape: f32[512,512], index: 2, kind: input, shape index: {}]
  %s3 = inlined_call_operand.hbm [shape: f32[1,512], index: 3, kind: input, shape index: {}]
  %s4 = inlined_call_operand.vmem [shape: f32[1,512], index: 4, kind: input, shape index: {}]
  %s5 = inlined_call_operand.hbm [shape: f32[32,512], index: 5, kind: output, shape index: {}]
  %s6 = sld [smem:[#allocation0]]
  $region77: #{tpu_custom_call.1} parent=0
    _
  %s8 = ssub.s32 1, %s6
  %s9 = scalar_select 0, %s8, %s6
  %10 = sst [smem:[#allocation3]] %s0
  $region1: #{tpu_custom_call.1} parent=0
    #allocation4 [shape = 'u8[65536]{0}', space=vmem, size = 0x10000, scoped, tag = 'input window, operand 1']
    #allocation5 [shape = 's32[2]{0}', space=sflag, size = 0x8, scoped, tag = 'scoped memory for tpu_custom_call.1']
    #allocation6 [shape = 's32[2]{0}', space=sflag, size = 0x8, scoped, tag = 'scoped memory for tpu_custom_call.1']
    #allocation7 [shape = 'u8[524288]{0}', space=vmem, size = 0x80000, scoped, tag = 'input window, operand 2']
    #allocation8 [shape = 's32[2]{0}', space=sflag, size = 0x8, scoped, tag = 'scoped memory for tpu_custom_call.1']
    #allocation9 [shape = 'u8[2048]{0}', space=vmem, size = 0x800, scoped, tag = 'input window, operand 3']
    #allocation10 [shape = 'u8[32768]{0}', space=vmem, size = 0x8000, scoped, tag = 'output window, operand 0']
    %11 = vsyncpa [#allocation5], 0
    %s12 = scalar_lea.sflag [#allocation5], 1
    %13 = vsyncpa %s12, 0
    %14 = vsyncpa [#allocation8], 0
    %s15 = scalar_lea.sflag [#allocation8], 1
    %16 = vsyncpa %s15, 0
    %17 = vsyncpa [#allocation6], 0
    %s18 = scalar_lea.sflag [#allocation6], 1
    %19 = vsyncpa %s18, 0
    loop: start=0, step=1, limit=10
    $region2: #{tpu_custom_call.1} parent=1 // loop_pre_header
      _
    $region3: #{tpu_custom_call.1} parent=1 // loop_header
      %s21 = sphi 0, %s25
      %p22 = scmp.ge.s32.totalorder %s21, 10
      %s28 = sphi 0, %s47
      %s29 = sphi 0, %s43
      %s30 = sphi 0, %s39
      %s31 = sphi 0, %s28
      %s32 = sphi 0, %s29
      %s33 = sphi 0, %s30
      %s34 = sphi 0, %s31
      %s35 = sphi 0, %s32
      %s36 = sphi 0, %s33
      %s50 = sphi 0, %s52
      %s53 = sphi 0, %s50
      %s54 = sphi 0, %s53
      %s70 = sphi 0, %s54
      %s78 = sphi 0, %s80
      %s81 = sphi 0, %s78
      %s82 = sphi 0, %s81
      %s98 = sphi 0, %s82
      %s104 = sphi 0, %s106
      %s107 = sphi 0, %s104
      %s108 = sphi 0, %s107
      %s124 = sphi 0, %s108
      %s130 = sphi 0, %s132
      %s133 = sphi 0, %s130
      %s134 = sphi 0, %s133
      %s150 = sphi 0, %s134
      %s158 = sphi 0, %s160
      %s161 = sphi 0, %s158
      %s162 = sphi 0, %s161
      %s178 = sphi 0, %s162
    $region4: #{tpu_custom_call.1} parent=1 // loop_header_branch
      %24 = sbr.rel (%p22) target = $region8
    $region5: #{tpu_custom_call.1} parent=1 // loop_body
      %s26 = ssub.s32 %s21, 1
      %s27 = ssub.s32 %s21, 2
      %s37 = sadd.s32 1, %s30
      %p38 = scmp.ge.s32.totalorder %s37, 2
      %s39 = scalar_select %p38, 0, %s37
      %s40 = sadd.s32 1, %s29
      %s41 = scalar_select %p38, %s40, %s29
      %p42 = scmp.ge.s32.totalorder %s41, 2
      %s43 = scalar_select %p42, 0, %s41
      %s44 = sadd.s32 1, %s28
      %s45 = scalar_select %p42, %s44, %s28
      %p46 = scmp.ge.s32.totalorder %s45, 2
      %s47 = scalar_select %p46, 0, %s45
      %s48 = ssub.s32 %s28, %s47
      %p49 = scmp.eq.s32.totalorder %s48, 0
      %s51 = sadd.s32 %s50, 1
      %s52 = scalar_select %p49, %s50, %s51
      %p55 = pneg %p49
      %p56 = scmp.eq.s32.totalorder %s21, 7
      %p57 = por %p55, %p56
      %p58 = scmp.ne.s32.totalorder %s50, %s53
      %p59 = scmp.eq.s32.totalorder %s21, 0
      %p60 = por %p58, %p59
      %p61 = scmp.ne.s32.totalorder %s50, %s53
      %p62 = scmp.eq.s32.totalorder %s26, 7
      %p63 = por %p61, %p62
      %p64 = scmp.ne.s32.totalorder %s53, %s54
      %p65 = scmp.eq.s32.totalorder %s26, 0
      %p66 = por %p64, %p65
      %p67 = scmp.ne.s32.totalorder %s53, %s54
      %p68 = scmp.eq.s32.totalorder %s27, 7
      %p69 = por %p67, %p68
      %p71 = scmp.ne.s32.totalorder %s54, %s70
      %p72 = scmp.eq.s32.totalorder %s27, 0
      %p73 = por %p71, %p72
      %s74 = ssub.s32 %s29, %s43
      %s75 = ssub.s32 %s30, %s39
      %s76 = sor.u32 %s74, %s75
      %p77 = scmp.eq.s32.totalorder %s76, 0
      %s79 = sadd.s32 %s78, 1
      %s80 = scalar_select %p77, %s78, %s79
      %p83 = pneg %p77
      %p84 = scmp.eq.s32.totalorder %s21, 7
      %p85 = por %p83, %p84
      %p86 = scmp.ne.s32.totalorder %s78, %s81
      %p87 = scmp.eq.s32.totalorder %s21, 0
      %p88 = por %p86, %p87
      %p89 = scmp.ne.s32.totalorder %s78, %s81
      %p90 = scmp.eq.s32.totalorder %s26, 7
      %p91 = por %p89, %p90
      %p92 = scmp.ne.s32.totalorder %s81, %s82
      %p93 = scmp.eq.s32.totalorder %s26, 0
      %p94 = por %p92, %p93
      %p95 = scmp.ne.s32.totalorder %s81, %s82
      %p96 = scmp.eq.s32.totalorder %s27, 7
      %p97 = por %p95, %p96
      %p99 = scmp.ne.s32.totalorder %s82, %s98
      %p100 = scmp.eq.s32.totalorder %s27, 0
      %p101 = por %p99, %p100
      %s102 = ssub.s32 %s29, %s43
      %p103 = scmp.eq.s32.totalorder %s102, 0
      %s105 = sadd.s32 %s104, 1
      %s106 = scalar_select %p103, %s104, %s105
      %p109 = pneg %p103
      %p110 = scmp.eq.s32.totalorder %s21, 7
      %p111 = por %p109, %p110
      %p112 = scmp.ne.s32.totalorder %s104, %s107
      %p113 = scmp.eq.s32.totalorder %s21, 0
      %p114 = por %p112, %p113
      %p115 = scmp.ne.s32.totalorder %s104, %s107
      %p116 = scmp.eq.s32.totalorder %s26, 7
      %p117 = por %p115, %p116
      %p118 = scmp.ne.s32.totalorder %s107, %s108
      %p119 = scmp.eq.s32.totalorder %s26, 0
      %p120 = por %p118, %p119
      %p121 = scmp.ne.s32.totalorder %s107, %s108
      %p122 = scmp.eq.s32.totalorder %s27, 7
      %p123 = por %p121, %p122
      %p125 = scmp.ne.s32.totalorder %s108, %s124
      %p126 = scmp.eq.s32.totalorder %s27, 0
      %p127 = por %p125, %p126
      %s128 = ssub.s32 %s29, %s43
      %p129 = scmp.eq.s32.totalorder %s128, 0
      %s131 = sadd.s32 %s130, 1
      %s132 = scalar_select %p129, %s130, %s131
      %p135 = pneg %p129
      %p136 = scmp.eq.s32.totalorder %s21, 7
      %p137 = por %p135, %p136
      %p138 = scmp.ne.s32.totalorder %s130, %s133
      %p139 = scmp.eq.s32.totalorder %s21, 0
      %p140 = por %p138, %p139
      %p141 = scmp.ne.s32.totalorder %s130, %s133
      %p142 = scmp.eq.s32.totalorder %s26, 7
      %p143 = por %p141, %p142
      %p144 = scmp.ne.s32.totalorder %s133, %s134
      %p145 = scmp.eq.s32.totalorder %s26, 0
      %p146 = por %p144, %p145
      %p147 = scmp.ne.s32.totalorder %s133, %s134
      %p148 = scmp.eq.s32.totalorder %s27, 7
      %p149 = por %p147, %p148
      %p151 = scmp.ne.s32.totalorder %s134, %s150
      %p152 = scmp.eq.s32.totalorder %s27, 0
      %p153 = por %p151, %p152
      %s154 = ssub.s32 %s28, %s47
      %s155 = ssub.s32 %s29, %s43
      %s156 = sor.u32 %s154, %s155
      %p157 = scmp.eq.s32.totalorder %s156, 0
      %s159 = sadd.s32 %s158, 1
      %s160 = scalar_select %p157, %s158, %s159
      %p163 = pneg %p157
      %p164 = scmp.eq.s32.totalorder %s21, 7
      %p165 = por %p163, %p164
      %p166 = scmp.ne.s32.totalorder %s158, %s161
      %p167 = scmp.eq.s32.totalorder %s21, 0
      %p168 = por %p166, %p167
      %p169 = scmp.ne.s32.totalorder %s158, %s161
      %p170 = scmp.eq.s32.totalorder %s26, 7
      %p171 = por %p169, %p170
      %p172 = scmp.ne.s32.totalorder %s161, %s162
      %p173 = scmp.eq.s32.totalorder %s26, 0
      %p174 = por %p172, %p173
      %p175 = scmp.ne.s32.totalorder %s161, %s162
      %p176 = scmp.eq.s32.totalorder %s27, 7
      %p177 = por %p175, %p176
      %p179 = scmp.ne.s32.totalorder %s162, %s178
      %p180 = scmp.eq.s32.totalorder %s27, 0
      %p181 = por %p179, %p180
      %p182 = scmp.le.s32.totalorder 1, %s21
      %p183 = scmp.lt.s32.totalorder %s21, 9
      %p184 = pnand %p182, %p183
      %p185 = pneg %p184
      // Predicated region
      $region9: #{tpu_custom_call.1} parent=5 // pred_check
        _
      $region10: #{tpu_custom_call.1} parent=5 // pred_check_branch
        %187 = sbr.rel (%p184) target = $region12
      $region11: #{tpu_custom_call.1} parent=5 // pred_region
        %s188 = ssub.s32 %s21, 1
      $region12: #{tpu_custom_call.1} parent=5 // pred_fallthru
        _
      %p189 = scmp.lt.s32.totalorder %s21, 8
      // Predicated region
      $region13: #{tpu_custom_call.1} parent=5 // pred_check
        %p190 = pneg %p189
      $region14: #{tpu_custom_call.1} parent=5 // pred_check_branch
        %192 = sbr.rel (%p190) target = $region16
      $region15: #{tpu_custom_call.1} parent=5 // pred_region
        // Predicated region
        $region17: #{tpu_custom_call.1} parent=15 // pred_check
          %p193 = pneg %p60
        $region18: #{tpu_custom_call.1} parent=15 // pred_check_branch
          %195 = sbr.rel (%p193) target = $region20
        $region19: #{tpu_custom_call.1} parent=15 // pred_region
          %s196 = sand.u32 %s50, 1
          %s197 = scalar_lea.sflag [#allocation5], %s196
          %s198 = sand.u32 %s50, 1
          %s199 = smul.addr %s198, 64
          %s200 = scalar_lea.vmem [#allocation4], %s199
          %s201 = smul.u32 2, %s28
          %203 = vsyncadd %s197, 0
          %s204 = smul.addr %s201, 4
          %s205 = smul.addr %s204, 8
          %s206 = scalar_lea.hbm %s1, %s205
          %s207 = sshll.u32 %s206, 4
          %s208 = int_to_ptr.hbm [resolvable:$true] %s207
          %s209 = sshll.u32 %s200, 4
          %s210 = int_to_ptr.vmem [resolvable:$true] %s209
          %215 = dma.hbm_to_vmem [thread:$0]  %s208, 1024, %s210, %s197, 512, 512, 32
        $region20: #{tpu_custom_call.1} parent=15 // pred_fallthru
          _
        // Predicated region
        $region21: #{tpu_custom_call.1} parent=15 // pred_check
          %p216 = pneg %p88
        $region22: #{tpu_custom_call.1} parent=15 // pred_check_branch
          %218 = sbr.rel (%p216) target = $region24
        $region23: #{tpu_custom_call.1} parent=15 // pred_region
          %s219 = sand.u32 %s21, 1
          %s220 = scalar_lea.sflag [#allocation8], %s219
          %s221 = sand.u32 %s78, 1
          %s222 = smul.addr %s221, 512
          %s223 = scalar_lea.vmem [#allocation7], %s222
          %s224 = smul.u32 32, %s29
          %s225 = smul.u32 2, %s30
          %227 = vsyncadd %s220, 0
          %s228 = smul.addr %s224, 4
          %s229 = sadd.s32 %s225, %s228
          %s230 = smul.addr %s229, 8
          %s231 = scalar_lea.hbm %s2, %s230
          %s232 = sshll.u32 %s231, 4
          %s233 = int_to_ptr.hbm [resolvable:$true] %s232
          %s234 = sshll.u32 %s223, 4
          %s235 = int_to_ptr.vmem [resolvable:$true] %s234
          %240 = dma.hbm_to_vmem [thread:$0]  %s233, 8192, %s235, %s220, 512, 256, 16
        $region24: #{tpu_custom_call.1} parent=15 // pred_fallthru
          _
        // Predicated region
        $region25: #{tpu_custom_call.1} parent=15 // pred_check
          %p241 = pneg %p114
        $region26: #{tpu_custom_call.1} parent=15 // pred_check_branch
          %243 = sbr.rel (%p241) target = $region28
        $region27: #{tpu_custom_call.1} parent=15 // pred_region
          %s244 = sand.u32 %s21, 1
          %s245 = scalar_lea.sflag [#allocation8], %s244
          %s246 = sand.u32 %s104, 1
          %s247 = smul.addr %s246, 2
          %s248 = scalar_lea.vmem [#allocation9], %s247
          %s249 = smul.u32 2, %s29
          %251 = vsyncadd %s245, 0
          %s252 = scalar_lea.hbm %s3, %s249
          %s254 = sshll.u32 %s252, 4
          %s255 = int_to_ptr.hbm [resolvable:$true] %s254
          %s256 = sshll.u32 %s248, 4
          %s257 = int_to_ptr.vmem [resolvable:$true] %s256
          %259 = dma.hbm_to_vmem [thread:$0]  %s255, 32, %s257, %s245
        $region28: #{tpu_custom_call.1} parent=15 // pred_fallthru
          _
        // Predicated region
        $region29: #{tpu_custom_call.1} parent=15 // pred_check
          %p260 = pneg %p140
        $region30: #{tpu_custom_call.1} parent=15 // pred_check_branch
          %262 = sbr.rel (%p260) target = $region32
        $region31: #{tpu_custom_call.1} parent=15 // pred_region
          %s263 = smul.u32 2, %s29
          %p264 = scmp.lt.s32.totalorder %s263, 3
          %s265 = scalar_select %p264, %s263, 3
          %s266 = scalar_lea.vmem %s4, %s265
          %s267 = smul.u32 2, %s29
        $region32: #{tpu_custom_call.1} parent=15 // pred_fallthru
          _
      $region16: #{tpu_custom_call.1} parent=5 // pred_fallthru
        _
      %p268 = scmp.le.s32.totalorder 1, %s21
      %p269 = scmp.lt.s32.totalorder %s21, 9
      %p270 = pnand %p268, %p269
      %p271 = pneg %p270
      // Predicated region
      $region33: #{tpu_custom_call.1} parent=5 // pred_check
        _
      $region34: #{tpu_custom_call.1} parent=5 // pred_check_branch
        %273 = sbr.rel (%p270) target = $region36
      $region35: #{tpu_custom_call.1} parent=5 // pred_region
        %s274 = ssub.s32 %s21, 1
        %s275 = sand.u32 %s53, 1
        %s276 = scalar_lea.sflag [#allocation5], %s275
        %s277 = sand.u32 %s53, 1
        %s278 = smul.addr %s277, 64
        %s279 = scalar_lea.vmem [#allocation4], %s278
        // Predicated region
        $region37: #{tpu_custom_call.1} parent=35 // pred_check
          %p280 = pneg %p66
        $region38: #{tpu_custom_call.1} parent=35 // pred_check_branch
          %282 = sbr.rel (%p280) target = $region40
        $region39: #{tpu_custom_call.1} parent=35 // pred_region
          %284 = dma.done %s276, 1024
        $region40: #{tpu_custom_call.1} parent=35 // pred_fallthru
          _
        %s285 = sand.u32 %s26, 1
        %s286 = scalar_lea.sflag [#allocation8], %s285
        %s287 = sand.u32 %s81, 1
        %s288 = smul.addr %s287, 512
        %s289 = scalar_lea.vmem [#allocation7], %s288
        // Predicated region
        $region41: #{tpu_custom_call.1} parent=35 // pred_check
          %p290 = pneg %p94
        $region42: #{tpu_custom_call.1} parent=35 // pred_check_branch
          %292 = sbr.rel (%p290) target = $region44
        $region43: #{tpu_custom_call.1} parent=35 // pred_region
          %294 = dma.done %s286, 8192
        $region44: #{tpu_custom_call.1} parent=35 // pred_fallthru
          _
        %s295 = sand.u32 %s26, 1
        %s296 = scalar_lea.sflag [#allocation8], %s295
        %s297 = sand.u32 %s107, 1
        %s298 = smul.addr %s297, 2
        %s299 = scalar_lea.vmem [#allocation9], %s298
        // Predicated region
        $region45: #{tpu_custom_call.1} parent=35 // pred_check
          %p300 = pneg %p120
        $region46: #{tpu_custom_call.1} parent=35 // pred_check_branch
          %302 = sbr.rel (%p300) target = $region48
        $region47: #{tpu_custom_call.1} parent=35 // pred_region
          %304 = dma.done %s296, 32
        $region48: #{tpu_custom_call.1} parent=35 // pred_fallthru
          _
        %s305 = sand.u32 %s53, 1
        %s306 = scalar_lea.sflag [#allocation5], %s305
        %s307 = sand.u32 %s53, 1
        %s308 = smul.addr %s307, 64
        %s309 = scalar_lea.vmem [#allocation4], %s308
        %p310 = pneg %p66
        %p311 = pneg %p63
        %s312 = sand.u32 %s26, 1
        %s313 = scalar_lea.sflag [#allocation8], %s312
        %s314 = sand.u32 %s81, 1
        %s315 = smul.addr %s314, 512
        %s316 = scalar_lea.vmem [#allocation7], %s315
        %p317 = pneg %p94
        %p318 = pneg %p91
        %s319 = sand.u32 %s26, 1
        %s320 = scalar_lea.sflag [#allocation8], %s319
        %s321 = sand.u32 %s107, 1
        %s322 = smul.addr %s321, 2
        %s323 = scalar_lea.vmem [#allocation9], %s322
        %p324 = pneg %p120
        %p325 = pneg %p117
        %s326 = smul.u32 2, %s32
        %p327 = scmp.lt.s32.totalorder %s326, 3
        %s328 = scalar_select %p327, %s326, 3
        %s329 = scalar_lea.vmem %s4, %s328
        %p330 = pneg %p146
        %p331 = pneg %p143
        %p332 = pneg %p174
        %p333 = pneg %p171
        %s334 = sand.u32 %s161, 1
        %s335 = scalar_lea.sflag [#allocation6], %s334
        %s336 = sand.u32 %s161, 1
        %s337 = smul.addr %s336, 32
        %s338 = scalar_lea.vmem [#allocation10], %s337
        %s339 = smul.u32 2, %s31
        %s340 = smul.u32 32, %s32
        %s341 = smul.u32 2, %s33
        %s342 = smul.u32 2, %s32
        %s343 = smul.u32 2, %s32
        %p344 = scmp.lt.s32.totalorder %s343, 3
        %s345 = scalar_select %p344, %s343, 3
        %s346 = scalar_lea.vmem %s4, %s345
        %s347 = smul.u32 2, %s32
        %s348 = smul.u32 2, %s31
        %s349 = smul.u32 2, %s32
        %p350 = scmp.eq.s32.totalorder %s33, 0
        // Predicated region
        $region49: #{tpu_custom_call.1} parent=35 // pred_check
          %p351 = pneg %p350
        $region50: #{tpu_custom_call.1} parent=35 // pred_check_branch
          %353 = sbr.rel (%p351) target = $region52
        $region51: #{tpu_custom_call.1} parent=35 // pred_region
          %v354 = vld [vmem:[%s299] sm:$0x3]
          %v356 = vperm.slane %v354, 0
          %v357 = vperm.slane %v354, 1
          %360 = vst [vmem:[%s338] sm:$0xff] %v356
          %361 = vst [vmem:[%s338 + $0x8] sm:$0xff] %v357
          %362 = vst [vmem:[%s338 + $0x10] sm:$0xff] %v356
          %363 = vst [vmem:[%s338 + $0x18] sm:$0xff] %v357
        $region52: #{tpu_custom_call.1} parent=35 // pred_fallthru
          _
        %s364 = smul.u32 %s33, 256
        %s365 = sshra.s32 %s364, 7
        %s366 = sand.u32 %s364, 127
        %s367 = smul.addr %s365, 8
        %s368 = scalar_lea.vmem %s279, %s367 [#allocation4]
        %v369 = vld [vmem:[%s368] sm:$0xff]
        %v370 = vld [vmem:[%s368 + $0x8] sm:$0xff]
        %v371 = vld [vmem:[%s368 + $0x20] sm:$0xff]
        %v372 = vld [vmem:[%s368 + $0x28] sm:$0xff]
        %v373 = vld [vmem:[%s338] sm:$0xff]
        %v374 = vld [vmem:[%s338 + $0x8] sm:$0xff]
        %v375 = vld [vmem:[%s338 + $0x10] sm:$0xff]
        %v376 = vld [vmem:[%s338 + $0x18] sm:$0xff]
        %v377 = vpack.c.bf16 %v371, %v369
        %v378 = vpack.c.bf16 %v372, %v370
        %v379 = vld [vmem:[%s289] sm:$0xff]
        %v380 = vld [vmem:[%s289 + $0x8] sm:$0xff]
        %v381 = vld [vmem:[%s289 + $0x10] sm:$0xff]
        %v382 = vld [vmem:[%s289 + $0x18] sm:$0xff]
        %v383 = vld [vmem:[%s289 + $0x20] sm:$0xff]
        %v384 = vld [vmem:[%s289 + $0x28] sm:$0xff]
        %v385 = vld [vmem:[%s289 + $0x30] sm:$0xff]
        %v386 = vld [vmem:[%s289 + $0x38] sm:$0xff]
        %v387 = vld [vmem:[%s289 + $0x40] sm:$0xff]
        %v388 = vld [vmem:[%s289 + $0x48] sm:$0xff]
        %v389 = vld [vmem:[%s289 + $0x50] sm:$0xff]
        %v390 = vld [vmem:[%s289 + $0x58] sm:$0xff]
        %v391 = vld [vmem:[%s289 + $0x60] sm:$0xff]
        %v392 = vld [vmem:[%s289 + $0x68] sm:$0xff]
        %v393 = vld [vmem:[%s289 + $0x70] sm:$0xff]
        %v394 = vld [vmem:[%s289 + $0x78] sm:$0xff]
        %v395 = vld [vmem:[%s289 + $0x80] sm:$0xff]
        %v396 = vld [vmem:[%s289 + $0x88] sm:$0xff]
        %v397 = vld [vmem:[%s289 + $0x90] sm:$0xff]
        %v398 = vld [vmem:[%s289 + $0x98] sm:$0xff]
        %v399 = vld [vmem:[%s289 + $0xa0] sm:$0xff]
        %v400 = vld [vmem:[%s289 + $0xa8] sm:$0xff]
        %v401 = vld [vmem:[%s289 + $0xb0] sm:$0xff]
        %v402 = vld [vmem:[%s289 + $0xb8] sm:$0xff]
        %v403 = vld [vmem:[%s289 + $0xc0] sm:$0xff]
        %v404 = vld [vmem:[%s289 + $0xc8] sm:$0xff]
        %v405 = vld [vmem:[%s289 + $0xd0] sm:$0xff]
        %v406 = vld [vmem:[%s289 + $0xd8] sm:$0xff]
        %v407 = vld [vmem:[%s289 + $0xe0] sm:$0xff]
        %v408 = vld [vmem:[%s289 + $0xe8] sm:$0xff]
        %v409 = vld [vmem:[%s289 + $0xf0] sm:$0xff]
        %v410 = vld [vmem:[%s289 + $0xf8] sm:$0xff]
        %v411 = vld [vmem:[%s289 + $0x100] sm:$0xff]
        %v412 = vld [vmem:[%s289 + $0x108] sm:$0xff]
        %v413 = vld [vmem:[%s289 + $0x110] sm:$0xff]
        %v414 = vld [vmem:[%s289 + $0x118] sm:$0xff]
        %v415 = vld [vmem:[%s289 + $0x120] sm:$0xff]
        %v416 = vld [vmem:[%s289 + $0x128] sm:$0xff]
        %v417 = vld [vmem:[%s289 + $0x130] sm:$0xff]
        %v418 = vld [vmem:[%s289 + $0x138] sm:$0xff]
        %v419 = vld [vmem:[%s289 + $0x140] sm:$0xff]
        %v420 = vld [vmem:[%s289 + $0x148] sm:$0xff]
        %v421 = vld [vmem:[%s289 + $0x150] sm:$0xff]
        %v422 = vld [vmem:[%s289 + $0x158] sm:$0xff]
        %v423 = vld [vmem:[%s289 + $0x160] sm:$0xff]
        %v424 = vld [vmem:[%s289 + $0x168] sm:$0xff]
        %v425 = vld [vmem:[%s289 + $0x170] sm:$0xff]
        %v426 = vld [vmem:[%s289 + $0x178] sm:$0xff]
        %v427 = vld [vmem:[%s289 + $0x180] sm:$0xff]
        %v428 = vld [vmem:[%s289 + $0x188] sm:$0xff]
        %v429 = vld [vmem:[%s289 + $0x190] sm:$0xff]
        %v430 = vld [vmem:[%s289 + $0x198] sm:$0xff]
        %v431 = vld [vmem:[%s289 + $0x1a0] sm:$0xff]
        %v432 = vld [vmem:[%s289 + $0x1a8] sm:$0xff]
        %v433 = vld [vmem:[%s289 + $0x1b0] sm:$0xff]
        %v434 = vld [vmem:[%s289 + $0x1b8] sm:$0xff]
        %v435 = vld [vmem:[%s289 + $0x1c0] sm:$0xff]
        %v436 = vld [vmem:[%s289 + $0x1c8] sm:$0xff]
        %v437 = vld [vmem:[%s289 + $0x1d0] sm:$0xff]
        %v438 = vld [vmem:[%s289 + $0x1d8] sm:$0xff]
        %v439 = vld [vmem:[%s289 + $0x1e0] sm:$0xff]
        %v440 = vld [vmem:[%s289 + $0x1e8] sm:$0xff]
        %v441 = vld [vmem:[%s289 + $0x1f0] sm:$0xff]
        %v442 = vld [vmem:[%s289 + $0x1f8] sm:$0xff]
        %v443 = vpack.c.bf16 %v381, %v379
        %v444 = vpack.c.bf16 %v382, %v380
        %v445 = vpack.c.bf16 %v385, %v383
        %v446 = vpack.c.bf16 %v386, %v384
        %v447 = vpack.c.bf16 %v389, %v387
        %v448 = vpack.c.bf16 %v390, %v388
        %v449 = vpack.c.bf16 %v393, %v391
        %v450 = vpack.c.bf16 %v394, %v392
        %v451 = vpack.c.bf16 %v397, %v395
        %v452 = vpack.c.bf16 %v398, %v396
        %v453 = vpack.c.bf16 %v401, %v399
        %v454 = vpack.c.bf16 %v402, %v400
        %v455 = vpack.c.bf16 %v405, %v403
        %v456 = vpack.c.bf16 %v406, %v404
        %v457 = vpack.c.bf16 %v409, %v407
        %v458 = vpack.c.bf16 %v410, %v408
        %v459 = vpack.c.bf16 %v413, %v411
        %v460 = vpack.c.bf16 %v414, %v412
        %v461 = vpack.c.bf16 %v417, %v415
        %v462 = vpack.c.bf16 %v418, %v416
        %v463 = vpack.c.bf16 %v421, %v419
        %v464 = vpack.c.bf16 %v422, %v420
        %v465 = vpack.c.bf16 %v425, %v423
        %v466 = vpack.c.bf16 %v426, %v424
        %v467 = vpack.c.bf16 %v429, %v427
        %v468 = vpack.c.bf16 %v430, %v428
        %v469 = vpack.c.bf16 %v433, %v431
        %v470 = vpack.c.bf16 %v434, %v432
        %v471 = vpack.c.bf16 %v437, %v435
        %v472 = vpack.c.bf16 %v438, %v436
        %v473 = vpack.c.bf16 %v441, %v439
        %v474 = vpack.c.bf16 %v442, %v440
        %475 = vmatpush.bf16.xpose.msra.mxu0 %v457
        %476 = vmatpush.bf16.xpose.msra.mxu0 %v455
        %477 = vmatpush.bf16.xpose.msra.mxu0 %v453
        %478 = vmatpush.bf16.xpose.msra.mxu0 %v451
        %479 = vmatpush.bf16.xpose.msra.mxu0 %v449
        %480 = vmatpush.bf16.xpose.msra.mxu0 %v447
        %481 = vmatpush.bf16.xpose.msra.mxu0 %v445
        %482 = vmatpush.bf16.xpose.msra.mxu0 %v443
        %483 = vmatmul.bf16.gmra.mxu0 %v377
        %v484 = vpop.f32.mrf.mxu0
        %v485 = vadd.f32 0.0, %v484
        %v486 = vpop.f32.mrf.mxu0
        %v487 = vadd.f32 0.0, %v486
        %488 = vdwg.mxu0
        %489 = vmatpush.bf16.xpose.msra.mxu0 %v458
        %490 = vmatpush.bf16.xpose.msra.mxu0 %v456
        %491 = vmatpush.bf16.xpose.msra.mxu0 %v454
        %492 = vmatpush.bf16.xpose.msra.mxu0 %v452
        %493 = vmatpush.bf16.xpose.msra.mxu0 %v450
        %494 = vmatpush.bf16.xpose.msra.mxu0 %v448
        %495 = vmatpush.bf16.xpose.msra.mxu0 %v446
        %496 = vmatpush.bf16.xpose.msra.mxu0 %v444
        %497 = vmatmul.bf16.gmra.mxu0 %v378
        %v498 = vpop.f32.mrf.mxu0
        %v499 = vadd.f32 %v485, %v498
        %v500 = vpop.f32.mrf.mxu0
        %v501 = vadd.f32 %v487, %v500
        %502 = vdwg.mxu0
        %503 = vmatpush.bf16.xpose.msra.mxu0 %v473
        %504 = vmatpush.bf16.xpose.msra.mxu0 %v471
        %505 = vmatpush.bf16.xpose.msra.mxu0 %v469
        %506 = vmatpush.bf16.xpose.msra.mxu0 %v467
        %507 = vmatpush.bf16.xpose.msra.mxu0 %v465
        %508 = vmatpush.bf16.xpose.msra.mxu0 %v463
        %509 = vmatpush.bf16.xpose.msra.mxu0 %v461
        %510 = vmatpush.bf16.xpose.msra.mxu0 %v459
        %511 = vmatmul.bf16.gmra.mxu0 %v377
        %v512 = vpop.f32.mrf.mxu0
        %v513 = vadd.f32 0.0, %v512
        %v514 = vpop.f32.mrf.mxu0
        %v515 = vadd.f32 0.0, %v514
        %516 = vdwg.mxu0
        %517 = vmatpush.bf16.xpose.msra.mxu0 %v474
        %518 = vmatpush.bf16.xpose.msra.mxu0 %v472
        %519 = vmatpush.bf16.xpose.msra.mxu0 %v470
        %520 = vmatpush.bf16.xpose.msra.mxu0 %v468
        %521 = vmatpush.bf16.xpose.msra.mxu0 %v466
        %522 = vmatpush.bf16.xpose.msra.mxu0 %v464
        %523 = vmatpush.bf16.xpose.msra.mxu0 %v462
        %524 = vmatpush.bf16.xpose.msra.mxu0 %v460
        %525 = vmatmul.bf16.gmra.mxu0 %v378
        %v526 = vpop.f32.mrf.mxu0
        %v527 = vadd.f32 %v513, %v526
        %v528 = vpop.f32.mrf.mxu0
        %v529 = vadd.f32 %v515, %v528
        %530 = vdwg.mxu0
        %v531 = vadd.f32 %v373, %v499
        %v532 = vadd.f32 %v374, %v527
        %v533 = vadd.f32 %v375, %v501
        %v534 = vadd.f32 %v376, %v529
        %535 = vst [vmem:[%s338] sm:$0xff] %v531
        %536 = vst [vmem:[%s338 + $0x8] sm:$0xff] %v532
        %537 = vst [vmem:[%s338 + $0x10] sm:$0xff] %v533
        %538 = vst [vmem:[%s338 + $0x18] sm:$0xff] %v534
        %p539 = scmp.eq.s32.totalorder %s33, 1
        // Predicated region
        $region53: #{tpu_custom_call.1} parent=35 // pred_check
          %p540 = pneg %p539
        $region54: #{tpu_custom_call.1} parent=35 // pred_check_branch
          %542 = sbr.rel (%p540) target = $region56
        $region55: #{tpu_custom_call.1} parent=35 // pred_region
          %s543 = sld [smem:[#allocation3]]
          %s544 = smul.u32 %s31, 16
          %s545 = ssub.s32 %s543, %s544
          %p546 = scmp.gt.s32.totalorder %s545, 0
          %s547 = scalar_select %p546, %s545, 0
          %p548 = scmp.lt.s32.totalorder %s547, 16
          %s549 = scalar_select %p548, %s547, 16
          %p550 = scmp.eq.s32.totalorder %s549, 16
          // Predicated region
          $region57: #{tpu_custom_call.1} parent=55 // pred_check
            %p551 = pneg %p550
          $region58: #{tpu_custom_call.1} parent=55 // pred_check_branch
            %553 = sbr.rel (%p551) target = $region60
          $region59: #{tpu_custom_call.1} parent=55 // pred_region
            %v554 = vld [vmem:[%s346] sm:$0x3]
            %v556 = vperm.slane %v554, 0
            %v557 = vperm.slane %v554, 1
            %560 = vst [vmem:[%s338] sm:$0xff] %v556
            %561 = vst [vmem:[%s338 + $0x8] sm:$0xff] %v557
            %562 = vst [vmem:[%s338 + $0x10] sm:$0xff] %v556
            %563 = vst [vmem:[%s338 + $0x18] sm:$0xff] %v557
          $region60: #{tpu_custom_call.1} parent=55 // pred_fallthru
            _
          %p564 = scmp.gt.s32.totalorder %s549, 0
          %p565 = scmp.lt.s32.totalorder %s549, 16
          %p566 = pnand %p564, %p565
          %p567 = pneg %p566
          // Predicated region
          $region61: #{tpu_custom_call.1} parent=55 // pred_check
            _
          $region62: #{tpu_custom_call.1} parent=55 // pred_check_branch
            %569 = sbr.rel (%p566) target = $region64
          $region63: #{tpu_custom_call.1} parent=55 // pred_region
            %v570 = vlaneseq
            %v571 = vshrl.u32 %v570, 7
            %v572 = vadd.s32 %v571, 8
            %v573 = vstv %s549
            %vm574 = vcmp.lt.s32.totalorder %v571, %v573
            %vm575 = vcmp.lt.s32.totalorder %v572, %v573
            %v576 = vld [vmem:[%s346] sm:$0x3]
            %v577 = vld [vmem:[%s338] sm:$0xff]
            %v578 = vld [vmem:[%s338 + $0x8] sm:$0xff]
            %v579 = vld [vmem:[%s338 + $0x10] sm:$0xff]
            %v580 = vld [vmem:[%s338 + $0x18] sm:$0xff]
            %v581 = vsel %vm574, 1, 0
            %v582 = vsel %vm575, 1, 0
            %vm583 = vcmp.eq.s32.totalorder %v581, 1
            %vm584 = vcmp.eq.s32.totalorder %v582, 1
            %v586 = vperm.slane %v576, 0
            %v587 = vperm.slane %v576, 1
            %v590 = vsel %vm583, %v586, %v577
            %v591 = vsel %vm583, %v587, %v578
            %v592 = vsel %vm584, %v586, %v579
            %v593 = vsel %vm584, %v587, %v580
            %594 = vst [vmem:[%s338] sm:$0xff] %v590
            %595 = vst [vmem:[%s338 + $0x8] sm:$0xff] %v591
            %596 = vst [vmem:[%s338 + $0x10] sm:$0xff] %v592
            %597 = vst [vmem:[%s338 + $0x18] sm:$0xff] %v593
          $region64: #{tpu_custom_call.1} parent=55 // pred_fallthru
            _
        $region56: #{tpu_custom_call.1} parent=35 // pred_fallthru
          _
        %s598 = sand.u32 %s161, 1
        %s599 = scalar_lea.sflag [#allocation6], %s598
        %s600 = sand.u32 %s161, 1
        %s601 = smul.addr %s600, 32
        %s602 = scalar_lea.vmem [#allocation10], %s601
        // Predicated region
        $region65: #{tpu_custom_call.1} parent=35 // pred_check
          %p603 = pneg %p171
        $region66: #{tpu_custom_call.1} parent=35 // pred_check_branch
          %605 = sbr.rel (%p603) target = $region68
        $region67: #{tpu_custom_call.1} parent=35 // pred_region
          %s606 = smul.u32 2, %s31
          %s607 = smul.u32 2, %s32
          %609 = vsyncadd %s599, 0
          %s610 = smul.addr %s606, 4
          %s611 = sadd.s32 %s607, %s610
          %s612 = smul.addr %s611, 8
          %s613 = scalar_lea.hbm %s5, %s612
          %s614 = sshll.u32 %s602, 4
          %s615 = int_to_ptr.vmem [resolvable:$true] %s614
          %s616 = sshll.u32 %s613, 4
          %s617 = int_to_ptr.hbm [resolvable:$true] %s616
          %622 = dma.vmem_to_hbm [thread:$0]  %s615, 512, %s617, %s599, 256, 512, 16
        $region68: #{tpu_custom_call.1} parent=35 // pred_fallthru
          _
      $region36: #{tpu_custom_call.1} parent=5 // pred_fallthru
        _
      %p623 = scmp.le.s32.totalorder 2, %s21
      // Predicated region
      $region69: #{tpu_custom_call.1} parent=5 // pred_check
        %p624 = pneg %p623
      $region70: #{tpu_custom_call.1} parent=5 // pred_check_branch
        %626 = sbr.rel (%p624) target = $region72
      $region71: #{tpu_custom_call.1} parent=5 // pred_region
        %s627 = ssub.s32 %s21, 2
        // Predicated region
        $region73: #{tpu_custom_call.1} parent=71 // pred_check
          %p628 = pneg %p177
        $region74: #{tpu_custom_call.1} parent=71 // pred_check_branch
          %630 = sbr.rel (%p628) target = $region76
        $region75: #{tpu_custom_call.1} parent=71 // pred_region
          %s631 = sand.u32 %s162, 1
          %s632 = scalar_lea.sflag [#allocation6], %s631
          %s633 = sand.u32 %s162, 1
          %s634 = smul.addr %s633, 32
          %s635 = scalar_lea.vmem [#allocation10], %s634
          %637 = dma.done %s632, 512
        $region76: #{tpu_custom_call.1} parent=71 // pred_fallthru
          _
      $region72: #{tpu_custom_call.1} parent=5 // pred_fallthru
        _
    $region6: #{tpu_custom_call.1} parent=1 // loop_footer
      %s25 = sadd.s32 1, %s21
    $region7: #{tpu_custom_call.1} parent=1 // loop_footer_branch
      %20 = sbr.rel target = $region3
    $region8: #{tpu_custom_call.1} parent=1 // loop_exit
      _
    %638 = vsyncpa [#allocation5], 1
    %s639 = scalar_lea.sflag [#allocation5], 1
    %640 = vsyncpa %s639, 1
    %641 = vsyncpa [#allocation8], 1
    %s642 = scalar_lea.sflag [#allocation8], 1
    %643 = vsyncpa %s642, 1
    %644 = vsyncpa [#allocation6], 1
    %s645 = scalar_lea.sflag [#allocation6], 1
    %646 = vsyncpa %s645, 1

</llo_original>
